<compile_context>
chip_gen: v7x
topology: tpu7x:2x2x1
jax: 0.10.0
libtpu: 0.0.40
codegen_flags: <defaults>
</compile_context>

<pallas_src>
import functools

import jax
import jax.numpy as jnp
from jax.experimental import pallas as pl
from jax.experimental.pallas import tpu as pltpu


def _pool_kernel(x_ref, h_ref, pooled_ref, prov_ref, *, ks, stride, Hout, Wout):
    # x_ref:      (Hp, Wp, Ct)    -inf-padded image tile, channels-last
    # h_ref:      (ks*ks, 1, Ct)  learned per-(window-position, channel) offsets
    # pooled_ref: (Hout, Wout, Ct)
    # prov_ref:   (Hout, Wout, Ct) int32

    def window(kh, kw):
        # window element (kh, kw) for every *strided* output position; the
        # minormost (lane) dim C stays contiguous (stride 1).
        return x_ref[pl.ds(kh, Hout, stride=stride),
                     pl.ds(kw, Wout, stride=stride), :]

    best_val = window(0, 0) + h_ref[0]               # (Hout, Wout, Ct)
    best_idx = jnp.zeros(best_val.shape, jnp.int32)
    for k in range(1, ks * ks):
        kh, kw = divmod(k, ks)
        val = window(kh, kw) + h_ref[k]              # lane-aligned broadcast of h
        upd = val > best_val                         # strict '>' keeps first (lowest-k) index
        best_idx = jnp.where(upd, jnp.int32(k), best_idx)
        best_val = jnp.maximum(best_val, val)

    pooled_ref[...] = best_val.astype(pooled_ref.dtype)
    prov_ref[...] = best_idx


def parameterized_pool2d(x, h, *, kernel_size=3, stride=2):
    """x: (B, C, H, W) float32; h: (ks*ks, C) float32 (the module's (1, ks**2, C)
    parameter squeezed). Returns (pooled, provenance) like the module."""
    assert kernel_size % 2 == 1, "parameterized version only well-defined for odd ks"
    B, C, H, W = x.shape
    ks = kernel_size
    p = ks // 2
    Hout = -(-H // stride)            # == len(range(H)[::stride])
    Wout = -(-W // stride)
    Hp, Wp = H + 2 * p, W + 2 * p

    # channels-last + -inf spatial padding (F.pad(..., value=-inf))
    x_nhwc = jnp.transpose(x.astype(jnp.float32), (0, 2, 3, 1))
    xp = jnp.pad(x_nhwc, ((0, 0), (p, p), (p, p), (0, 0)),
                 constant_values=-jnp.inf)
    # TODO(synk): the -inf pad could be folded into the kernel with border masks
    # to save one HBM pass over the input (matters most on v5e).

    hv = h.astype(jnp.float32).reshape(ks * ks, 1, C)

    # Channel tiling: C is the lane axis; tile to 128 lanes when C is large.
    Ct = C if C <= 128 else 128
    Cp = -(-C // Ct) * Ct
    if Cp != C:
        xp = jnp.pad(xp, ((0, 0), (0, 0), (0, 0), (0, Cp - C)))
        hv = jnp.pad(hv, ((0, 0), (0, 0), (0, Cp - C)))
    nc = Cp // Ct
    # TODO(synk): for very large H*W also tile output rows (needs halo'd input blocks).

    kernel = functools.partial(_pool_kernel, ks=ks, stride=stride,
                               Hout=Hout, Wout=Wout)

    # Rough (8,128)-padded per-step VMEM estimate -> explicit budget (v7x: 64 MiB).
    lanes = -(-Ct // 128) * 128

    def _tile_bytes(major, sub):
        return major * (-(-sub // 8) * 8) * lanes * 4

    est = 2 * (_tile_bytes(Hp, Wp) + 2 * _tile_bytes(Hout, Wout)
               + _tile_bytes(ks * ks, 1))
    vmem_limit = int(min(64 * 1024 * 1024, max(32 * 1024 * 1024, 2 * est)))

    pooled_nhwc, prov_nhwc = pl.pallas_call(
        kernel,
        out_shape=(
            jax.ShapeDtypeStruct((B, Hout, Wout, Cp), jnp.float32),
            # TODO(synk): PyTorch returns int64 provenance; emit TPU-native int32.
            jax.ShapeDtypeStruct((B, Hout, Wout, Cp), jnp.int32),
        ),
        grid=(B, nc),
        in_specs=[
            pl.BlockSpec((None, Hp, Wp, Ct), lambda b, c: (b, 0, 0, c)),
            pl.BlockSpec((ks * ks, 1, Ct), lambda b, c: (0, 0, c)),
        ],
        out_specs=(
            pl.BlockSpec((None, Hout, Wout, Ct), lambda b, c: (b, 0, 0, c)),
            pl.BlockSpec((None, Hout, Wout, Ct), lambda b, c: (b, 0, 0, c)),
        ),
        compiler_params=pltpu.CompilerParams(
            dimension_semantics=("parallel", "parallel"),
            vmem_limit_bytes=vmem_limit,
        ),
    )(xp, hv)

    # back to the module's NCHW layout (on the already-strided, small outputs)
    pooled = jnp.transpose(pooled_nhwc[..., :C], (0, 3, 1, 2))
    prov = jnp.transpose(prov_nhwc[..., :C], (0, 3, 1, 2))
    return pooled, prov


def make_h(in_channels, kernel_size=3, init="zero", key=None):
    """Parameter init matching the module's __init__ (shape (ks*ks, C); module
    stores it as (1, ks*ks, C))."""
    ks2 = kernel_size * kernel_size
    if init == "zero":
        return jnp.zeros((ks2, in_channels), jnp.float32)
    fan_in = ks2 * in_channels
    bound = (6.0 / fan_in) ** 0.5
    return jax.random.uniform(key, (ks2, in_channels), jnp.float32, -bound, bound)


def _reference(x, h, ks, stride):
    """Pure-JAX reference of the torch forward (correctness check)."""
    B, C, H, W = x.shape
    p = ks // 2
    xp = jnp.pad(x, ((0, 0), (0, 0), (p, p), (p, p)), constant_values=-jnp.inf)
    vals = jnp.stack(
        [xp[:, :, kh:kh + H, kw:kw + W] + h[kh * ks + kw][None, :, None, None]
         for kh in range(ks) for kw in range(ks)],
        axis=0,
    )  # (ks*ks, B, C, H, W)
    best = jnp.max(vals, axis=0)
    idx = jnp.argmax(vals, axis=0).astype(jnp.int32)
    return best[:, :, ::stride, ::stride], idx[:, :, ::stride, ::stride]


if __name__ == "__main__":
    key = jax.random.PRNGKey(0)
    kx, kh = jax.random.split(key)
    B, C, H, W = 2, 4, 16, 16
    ks, stride = 3, 2

    x = jax.random.normal(kx, (B, C, H, W), dtype=jnp.float32)
    h = make_h(C, ks, init="kaiming", key=kh)   # nonzero h exercises the offset path

    pooled, prov = parameterized_pool2d(x, h, kernel_size=ks, stride=stride)
    jax.block_until_ready((pooled, prov))

    p_ref, i_ref = _reference(x, h, ks, stride)
    assert pooled.shape == (B, C, 8, 8) and pooled.dtype == jnp.float32
    assert prov.shape == (B, C, 8, 8) and prov.dtype == jnp.int32
    assert jnp.allclose(pooled, p_ref)
    assert jnp.array_equal(prov, i_ref)

    print("KERNEL_OK")
</pallas_src>

<mosaic_0001>
module attributes {stable_mosaic.version = 11 : i64} {
  func.func @_pool_kernel(%arg0: i32, %arg1: i32, %arg2: memref<1x18x18x4xf32, #tpu.memory_space<vmem>>, %arg3: memref<9x1x4xf32, #tpu.memory_space<vmem>>, %arg4: memref<1x8x8x4xf32, #tpu.memory_space<vmem>>, %arg5: memref<1x8x8x4xi32, #tpu.memory_space<vmem>>) attributes {dimension_semantics = [#tpu.dimension_semantics<parallel>, #tpu.dimension_semantics<parallel>], iteration_bounds = array<i64: 2, 1>, scalar_prefetch = 0 : i64, scratch_operands = 0 : i64, tpu.core_type = #tpu.core_type<tc>, window_params = [{transform_indices = @transform_0, window_bounds = array<i64: 1, 18, 18, 4>}, {transform_indices = @transform_1, window_bounds = array<i64: 9, 1, 4>}, {transform_indices = @transform_2, window_bounds = array<i64: 1, 8, 8, 4>}, {transform_indices = @transform_3, window_bounds = array<i64: 1, 8, 8, 4>}]} {
    %c0 = arith.constant 0 : index
    %c0_0 = arith.constant 0 : index
    %c0_1 = arith.constant 0 : index
    %c0_2 = arith.constant 0 : index
    %0 = tpu.strided_load %arg2[%c0, %c0_0, %c0_1, %c0_2] {strides = array<i32: 1, 2, 2, 1>} : memref<1x18x18x4xf32, #tpu.memory_space<vmem>>, vector<1x8x8x4xf32>
    %1 = vector.shape_cast %0 : vector<1x8x8x4xf32> to vector<8x8x4xf32>
    %c0_3 = arith.constant 0 : index
    %c0_4 = arith.constant 0 : index
    %c0_5 = arith.constant 0 : index
    %2 = vector.load %arg3[%c0_3, %c0_4, %c0_5] : memref<9x1x4xf32, #tpu.memory_space<vmem>>, vector<1x1x4xf32>
    %3 = vector.shape_cast %2 : vector<1x1x4xf32> to vector<1x4xf32>
    %4 = vector.shape_cast %3 : vector<1x4xf32> to vector<1x1x4xf32>
    %5 = vector.broadcast %4 : vector<1x1x4xf32> to vector<8x8x4xf32>
    %6 = arith.addf %1, %5 : vector<8x8x4xf32>
    %c0_i32 = arith.constant 0 : i32
    %7 = vector.broadcast %c0_i32 : i32 to vector<8x8x4xi32>
    %c0_6 = arith.constant 0 : index
    %c0_7 = arith.constant 0 : index
    %c1 = arith.constant 1 : index
    %c0_8 = arith.constant 0 : index
    %8 = tpu.strided_load %arg2[%c0_6, %c0_7, %c1, %c0_8] {strides = array<i32: 1, 2, 2, 1>} : memref<1x18x18x4xf32, #tpu.memory_space<vmem>>, vector<1x8x8x4xf32>
    %9 = vector.shape_cast %8 : vector<1x8x8x4xf32> to vector<8x8x4xf32>
    %c1_9 = arith.constant 1 : index
    %c0_10 = arith.constant 0 : index
    %c0_11 = arith.constant 0 : index
    %10 = vector.load %arg3[%c1_9, %c0_10, %c0_11] : memref<9x1x4xf32, #tpu.memory_space<vmem>>, vector<1x1x4xf32>
    %11 = vector.shape_cast %10 : vector<1x1x4xf32> to vector<1x4xf32>
    %12 = vector.shape_cast %11 : vector<1x4xf32> to vector<1x1x4xf32>
    %13 = vector.broadcast %12 : vector<1x1x4xf32> to vector<8x8x4xf32>
    %14 = arith.addf %9, %13 : vector<8x8x4xf32>
    %15 = arith.cmpf ogt, %14, %6 : vector<8x8x4xf32>
    %c1_i32 = arith.constant 1 : i32
    %16 = vector.broadcast %c1_i32 : i32 to vector<8x8x4xi32>
    %17 = arith.select %15, %16, %7 : vector<8x8x4xi1>, vector<8x8x4xi32>
    %18 = arith.maximumf %6, %14 : vector<8x8x4xf32>
    %c0_12 = arith.constant 0 : index
    %c0_13 = arith.constant 0 : index
    %c2 = arith.constant 2 : index
    %c0_14 = arith.constant 0 : index
    %19 = tpu.strided_load %arg2[%c0_12, %c0_13, %c2, %c0_14] {strides = array<i32: 1, 2, 2, 1>} : memref<1x18x18x4xf32, #tpu.memory_space<vmem>>, vector<1x8x8x4xf32>
    %20 = vector.shape_cast %19 : vector<1x8x8x4xf32> to vector<8x8x4xf32>
    %c2_15 = arith.constant 2 : index
    %c0_16 = arith.constant 0 : index
    %c0_17 = arith.constant 0 : index
    %21 = vector.load %arg3[%c2_15, %c0_16, %c0_17] : memref<9x1x4xf32, #tpu.memory_space<vmem>>, vector<1x1x4xf32>
    %22 = vector.shape_cast %21 : vector<1x1x4xf32> to vector<1x4xf32>
    %23 = vector.shape_cast %22 : vector<1x4xf32> to vector<1x1x4xf32>
    %24 = vector.broadcast %23 : vector<1x1x4xf32> to vector<8x8x4xf32>
    %25 = arith.addf %20, %24 : vector<8x8x4xf32>
    %26 = arith.cmpf ogt, %25, %18 : vector<8x8x4xf32>
    %c2_i32 = arith.constant 2 : i32
    %27 = vector.broadcast %c2_i32 : i32 to vector<8x8x4xi32>
    %28 = arith.select %26, %27, %17 : vector<8x8x4xi1>, vector<8x8x4xi32>
    %29 = arith.maximumf %18, %25 : vector<8x8x4xf32>
    %c0_18 = arith.constant 0 : index
    %c1_19 = arith.constant 1 : index
    %c0_20 = arith.constant 0 : index
    %c0_21 = arith.constant 0 : index
    %30 = tpu.strided_load %arg2[%c0_18, %c1_19, %c0_20, %c0_21] {strides = array<i32: 1, 2, 2, 1>} : memref<1x18x18x4xf32, #tpu.memory_space<vmem>>, vector<1x8x8x4xf32>
    %31 = vector.shape_cast %30 : vector<1x8x8x4xf32> to vector<8x8x4xf32>
    %c3 = arith.constant 3 : index
    %c0_22 = arith.constant 0 : index
    %c0_23 = arith.constant 0 : index
    %32 = vector.load %arg3[%c3, %c0_22, %c0_23] : memref<9x1x4xf32, #tpu.memory_space<vmem>>, vector<1x1x4xf32>
    %33 = vector.shape_cast %32 : vector<1x1x4xf32> to vector<1x4xf32>
    %34 = vector.shape_cast %33 : vector<1x4xf32> to vector<1x1x4xf32>
    %35 = vector.broadcast %34 : vector<1x1x4xf32> to vector<8x8x4xf32>
    %36 = arith.addf %31, %35 : vector<8x8x4xf32>
    %37 = arith.cmpf ogt, %36, %29 : vector<8x8x4xf32>
    %c3_i32 = arith.constant 3 : i32
    %38 = vector.broadcast %c3_i32 : i32 to vector<8x8x4xi32>
    %39 = arith.select %37, %38, %28 : vector<8x8x4xi1>, vector<8x8x4xi32>
    %40 = arith.maximumf %29, %36 : vector<8x8x4xf32>
    %c0_24 = arith.constant 0 : index
    %c1_25 = arith.constant 1 : index
    %c1_26 = arith.constant 1 : index
    %c0_27 = arith.constant 0 : index
    %41 = tpu.strided_load %arg2[%c0_24, %c1_25, %c1_26, %c0_27] {strides = array<i32: 1, 2, 2, 1>} : memref<1x18x18x4xf32, #tpu.memory_space<vmem>>, vector<1x8x8x4xf32>
    %42 = vector.shape_cast %41 : vector<1x8x8x4xf32> to vector<8x8x4xf32>
    %c4 = arith.constant 4 : index
    %c0_28 = arith.constant 0 : index
    %c0_29 = arith.constant 0 : index
    %43 = vector.load %arg3[%c4, %c0_28, %c0_29] : memref<9x1x4xf32, #tpu.memory_space<vmem>>, vector<1x1x4xf32>
    %44 = vector.shape_cast %43 : vector<1x1x4xf32> to vector<1x4xf32>
    %45 = vector.shape_cast %44 : vector<1x4xf32> to vector<1x1x4xf32>
    %46 = vector.broadcast %45 : vector<1x1x4xf32> to vector<8x8x4xf32>
    %47 = arith.addf %42, %46 : vector<8x8x4xf32>
    %48 = arith.cmpf ogt, %47, %40 : vector<8x8x4xf32>
    %c4_i32 = arith.constant 4 : i32
    %49 = vector.broadcast %c4_i32 : i32 to vector<8x8x4xi32>
    %50 = arith.select %48, %49, %39 : vector<8x8x4xi1>, vector<8x8x4xi32>
    %51 = arith.maximumf %40, %47 : vector<8x8x4xf32>
    %c0_30 = arith.constant 0 : index
    %c1_31 = arith.constant 1 : index
    %c2_32 = arith.constant 2 : index
    %c0_33 = arith.constant 0 : index
    %52 = tpu.strided_load %arg2[%c0_30, %c1_31, %c2_32, %c0_33] {strides = array<i32: 1, 2, 2, 1>} : memref<1x18x18x4xf32, #tpu.memory_space<vmem>>, vector<1x8x8x4xf32>
    %53 = vector.shape_cast %52 : vector<1x8x8x4xf32> to vector<8x8x4xf32>
    %c5 = arith.constant 5 : index
    %c0_34 = arith.constant 0 : index
    %c0_35 = arith.constant 0 : index
    %54 = vector.load %arg3[%c5, %c0_34, %c0_35] : memref<9x1x4xf32, #tpu.memory_space<vmem>>, vector<1x1x4xf32>
    %55 = vector.shape_cast %54 : vector<1x1x4xf32> to vector<1x4xf32>
    %56 = vector.shape_cast %55 : vector<1x4xf32> to vector<1x1x4xf32>
    %57 = vector.broadcast %56 : vector<1x1x4xf32> to vector<8x8x4xf32>
    %58 = arith.addf %53, %57 : vector<8x8x4xf32>
    %59 = arith.cmpf ogt, %58, %51 : vector<8x8x4xf32>
    %c5_i32 = arith.constant 5 : i32
    %60 = vector.broadcast %c5_i32 : i32 to vector<8x8x4xi32>
    %61 = arith.select %59, %60, %50 : vector<8x8x4xi1>, vector<8x8x4xi32>
    %62 = arith.maximumf %51, %58 : vector<8x8x4xf32>
    %c0_36 = arith.constant 0 : index
    %c2_37 = arith.constant 2 : index
    %c0_38 = arith.constant 0 : index
    %c0_39 = arith.constant 0 : index
    %63 = tpu.strided_load %arg2[%c0_36, %c2_37, %c0_38, %c0_39] {strides = array<i32: 1, 2, 2, 1>} : memref<1x18x18x4xf32, #tpu.memory_space<vmem>>, vector<1x8x8x4xf32>
    %64 = vector.shape_cast %63 : vector<1x8x8x4xf32> to vector<8x8x4xf32>
    %c6 = arith.constant 6 : index
    %c0_40 = arith.constant 0 : index
    %c0_41 = arith.constant 0 : index
    %65 = vector.load %arg3[%c6, %c0_40, %c0_41] : memref<9x1x4xf32, #tpu.memory_space<vmem>>, vector<1x1x4xf32>
    %66 = vector.shape_cast %65 : vector<1x1x4xf32> to vector<1x4xf32>
    %67 = vector.shape_cast %66 : vector<1x4xf32> to vector<1x1x4xf32>
    %68 = vector.broadcast %67 : vector<1x1x4xf32> to vector<8x8x4xf32>
    %69 = arith.addf %64, %68 : vector<8x8x4xf32>
    %70 = arith.cmpf ogt, %69, %62 : vector<8x8x4xf32>
    %c6_i32 = arith.constant 6 : i32
    %71 = vector.broadcast %c6_i32 : i32 to vector<8x8x4xi32>
    %72 = arith.select %70, %71, %61 : vector<8x8x4xi1>, vector<8x8x4xi32>
    %73 = arith.maximumf %62, %69 : vector<8x8x4xf32>
    %c0_42 = arith.constant 0 : index
    %c2_43 = arith.constant 2 : index
    %c1_44 = arith.constant 1 : index
    %c0_45 = arith.constant 0 : index
    %74 = tpu.strided_load %arg2[%c0_42, %c2_43, %c1_44, %c0_45] {strides = array<i32: 1, 2, 2, 1>} : memref<1x18x18x4xf32, #tpu.memory_space<vmem>>, vector<1x8x8x4xf32>
    %75 = vector.shape_cast %74 : vector<1x8x8x4xf32> to vector<8x8x4xf32>
    %c7 = arith.constant 7 : index
    %c0_46 = arith.constant 0 : index
    %c0_47 = arith.constant 0 : index
    %76 = vector.load %arg3[%c7, %c0_46, %c0_47] : memref<9x1x4xf32, #tpu.memory_space<vmem>>, vector<1x1x4xf32>
    %77 = vector.shape_cast %76 : vector<1x1x4xf32> to vector<1x4xf32>
    %78 = vector.shape_cast %77 : vector<1x4xf32> to vector<1x1x4xf32>
    %79 = vector.broadcast %78 : vector<1x1x4xf32> to vector<8x8x4xf32>
    %80 = arith.addf %75, %79 : vector<8x8x4xf32>
    %81 = arith.cmpf ogt, %80, %73 : vector<8x8x4xf32>
    %c7_i32 = arith.constant 7 : i32
    %82 = vector.broadcast %c7_i32 : i32 to vector<8x8x4xi32>
    %83 = arith.select %81, %82, %72 : vector<8x8x4xi1>, vector<8x8x4xi32>
    %84 = arith.maximumf %73, %80 : vector<8x8x4xf32>
    %c0_48 = arith.constant 0 : index
    %c2_49 = arith.constant 2 : index
    %c2_50 = arith.constant 2 : index
    %c0_51 = arith.constant 0 : index
    %85 = tpu.strided_load %arg2[%c0_48, %c2_49, %c2_50, %c0_51] {strides = array<i32: 1, 2, 2, 1>} : memref<1x18x18x4xf32, #tpu.memory_space<vmem>>, vector<1x8x8x4xf32>
    %86 = vector.shape_cast %85 : vector<1x8x8x4xf32> to vector<8x8x4xf32>
    %c8 = arith.constant 8 : index
    %c0_52 = arith.constant 0 : index
    %c0_53 = arith.constant 0 : index
    %87 = vector.load %arg3[%c8, %c0_52, %c0_53] : memref<9x1x4xf32, #tpu.memory_space<vmem>>, vector<1x1x4xf32>
    %88 = vector.shape_cast %87 : vector<1x1x4xf32> to vector<1x4xf32>
    %89 = vector.shape_cast %88 : vector<1x4xf32> to vector<1x1x4xf32>
    %90 = vector.broadcast %89 : vector<1x1x4xf32> to vector<8x8x4xf32>
    %91 = arith.addf %86, %90 : vector<8x8x4xf32>
    %92 = arith.cmpf ogt, %91, %84 : vector<8x8x4xf32>
    %c8_i32 = arith.constant 8 : i32
    %93 = vector.broadcast %c8_i32 : i32 to vector<8x8x4xi32>
    %94 = arith.select %92, %93, %83 : vector<8x8x4xi1>, vector<8x8x4xi32>
    %95 = arith.maximumf %84, %91 : vector<8x8x4xf32>
    %c0_54 = arith.constant 0 : index
    %c0_55 = arith.constant 0 : index
    %c0_56 = arith.constant 0 : index
    %c0_57 = arith.constant 0 : index
    %96 = vector.load %arg4[%c0_54, %c0_55, %c0_56, %c0_57] : memref<1x8x8x4xf32, #tpu.memory_space<vmem>>, vector<1x8x8x4xf32>
    %97 = vector.shape_cast %96 : vector<1x8x8x4xf32> to vector<8x8x4xf32>
    %98 = vector.shape_cast %95 : vector<8x8x4xf32> to vector<1x8x8x4xf32>
    tpu.vector_store %arg4[%c0_54, %c0_55, %c0_56, %c0_57], %98 {strides = array<i32>} : memref<1x8x8x4xf32, #tpu.memory_space<vmem>>, vector<1x8x8x4xf32>,
    %c0_58 = arith.constant 0 : index
    %c0_59 = arith.constant 0 : index
    %c0_60 = arith.constant 0 : index
    %c0_61 = arith.constant 0 : index
    %99 = vector.load %arg5[%c0_58, %c0_59, %c0_60, %c0_61] : memref<1x8x8x4xi32, #tpu.memory_space<vmem>>, vector<1x8x8x4xi32>
    %100 = vector.shape_cast %99 : vector<1x8x8x4xi32> to vector<8x8x4xi32>
    %101 = vector.shape_cast %94 : vector<8x8x4xi32> to vector<1x8x8x4xi32>
    tpu.vector_store %arg5[%c0_58, %c0_59, %c0_60, %c0_61], %101 {strides = array<i32>} : memref<1x8x8x4xi32, #tpu.memory_space<vmem>>, vector<1x8x8x4xi32>,
    return
  }
  func.func @transform_0(%arg0: i32, %arg1: i32) -> (i32, i32, i32, i32) {
    %c0_i32 = arith.constant 0 : i32
    %c0_i32_0 = arith.constant 0 : i32
    %c0_i32_1 = arith.constant 0 : i32
    return %arg0, %c0_i32, %c0_i32_0, %arg1 : i32, i32, i32, i32
  }
  func.func @transform_1(%arg0: i32, %arg1: i32) -> (i32, i32, i32) {
    %c0_i32 = arith.constant 0 : i32
    %c0_i32_0 = arith.constant 0 : i32
    %c0_i32_1 = arith.constant 0 : i32
    return %c0_i32, %c0_i32_0, %arg1 : i32, i32, i32
  }
  func.func @transform_2(%arg0: i32, %arg1: i32) -> (i32, i32, i32, i32) {
    %c0_i32 = arith.constant 0 : i32
    %c0_i32_0 = arith.constant 0 : i32
    %c0_i32_1 = arith.constant 0 : i32
    return %arg0, %c0_i32, %c0_i32_0, %arg1 : i32, i32, i32, i32
  }
  func.func @transform_3(%arg0: i32, %arg1: i32) -> (i32, i32, i32, i32) {
    %c0_i32 = arith.constant 0 : i32
    %c0_i32_0 = arith.constant 0 : i32
    %c0_i32_1 = arith.constant 0 : i32
    return %arg0, %c0_i32, %c0_i32_0, %arg1 : i32, i32, i32, i32
  }
}

</mosaic_0001>

<llo_original>
// kernel: tpu_custom_call.1
$region0: #{tpu_custom_call.1}
  #allocation0 [shape = 'u32[]', space=smem, size = 0x4, offset = 0x4, fixed_abs, tag = 'smem constant byte address 0x4 - core index']
  #allocation1 [shape = 'u32[144,128]{1,0:T(1,128)}', space=vmem, size = 0x12000, scoped, tag = 'internal scratch']
  %s0 = inlined_call_operand.vmem [shape: f32[2,18,18,4], index: 0, kind: input, shape index: {}]
  %s1 = inlined_call_operand.vmem [shape: f32[9,1,4], index: 1, kind: input, shape index: {}]
  %s2 = inlined_call_operand.vmem [shape: f32[2,8,8,4], index: 2, kind: output, shape index: {0}]
  %s3 = inlined_call_operand.vmem [shape: s32[2,8,8,4], index: 3, kind: output, shape index: {1}]
  %4 = xla_tuple %s2, %s3
  %s5 = sld [smem:[#allocation0]]
  $region49: #{tpu_custom_call.1} parent=0
    _
  %s7 = ssub.s32 1, %s5
  %s8 = scalar_select 0, %s7, %s5
  loop: start=0, step=1, limit=4
  $region2: #{tpu_custom_call.1} parent=0 // loop_pre_header
    _
  $region3: #{tpu_custom_call.1} parent=0 // loop_header
    %s10 = sphi 0, %s14
    %p11 = scmp.ge.s32.totalorder %s10, 4
    %s17 = sphi 0, %s29
    %s18 = sphi 0, %s25
    %s19 = sphi 0, %s17
    %s20 = sphi 0, %s18
    %s21 = sphi 0, %s19
    %s22 = sphi 0, %s20
    %s34 = sphi 0, %s36
    %s37 = sphi 0, %s34
    %s38 = sphi 0, %s37
    %s54 = sphi 0, %s38
    %s60 = sphi 0, %s62
    %s63 = sphi 0, %s60
    %s64 = sphi 0, %s63
    %s80 = sphi 0, %s64
    %s88 = sphi 0, %s90
    %s91 = sphi 0, %s88
    %s92 = sphi 0, %s91
    %s108 = sphi 0, %s92
    %s116 = sphi 0, %s118
    %s119 = sphi 0, %s116
    %s120 = sphi 0, %s119
    %s136 = sphi 0, %s120
  $region4: #{tpu_custom_call.1} parent=0 // loop_header_branch
    %13 = sbr.rel (%p11) target = $region8
  $region5: #{tpu_custom_call.1} parent=0 // loop_body
    %s15 = ssub.s32 %s10, 1
    %s16 = ssub.s32 %s10, 2
    %s23 = sadd.s32 1, %s18
    %p24 = scmp.ge.s32.totalorder %s23, 1
    %s25 = scalar_select %p24, 0, %s23
    %s26 = sadd.s32 1, %s17
    %s27 = scalar_select %p24, %s26, %s17
    %p28 = scmp.ge.s32.totalorder %s27, 2
    %s29 = scalar_select %p28, 0, %s27
    %s30 = ssub.s32 %s17, %s29
    %s31 = ssub.s32 %s18, %s25
    %s32 = sor.u32 %s30, %s31
    %p33 = scmp.eq.s32.totalorder %s32, 0
    %s35 = sadd.s32 %s34, 1
    %s36 = scalar_select %p33, %s34, %s35
    %p39 = pneg %p33
    %p40 = scmp.eq.s32.totalorder %s10, 1
    %p41 = por %p39, %p40
    %p42 = scmp.ne.s32.totalorder %s34, %s37
    %p43 = scmp.eq.s32.totalorder %s10, 0
    %p44 = por %p42, %p43
    %p45 = scmp.ne.s32.totalorder %s34, %s37
    %p46 = scmp.eq.s32.totalorder %s15, 1
    %p47 = por %p45, %p46
    %p48 = scmp.ne.s32.totalorder %s37, %s38
    %p49 = scmp.eq.s32.totalorder %s15, 0
    %p50 = por %p48, %p49
    %p51 = scmp.ne.s32.totalorder %s37, %s38
    %p52 = scmp.eq.s32.totalorder %s16, 1
    %p53 = por %p51, %p52
    %p55 = scmp.ne.s32.totalorder %s38, %s54
    %p56 = scmp.eq.s32.totalorder %s16, 0
    %p57 = por %p55, %p56
    %s58 = ssub.s32 %s18, %s25
    %p59 = scmp.eq.s32.totalorder %s58, 0
    %s61 = sadd.s32 %s60, 1
    %s62 = scalar_select %p59, %s60, %s61
    %p65 = pneg %p59
    %p66 = scmp.eq.s32.totalorder %s10, 1
    %p67 = por %p65, %p66
    %p68 = scmp.ne.s32.totalorder %s60, %s63
    %p69 = scmp.eq.s32.totalorder %s10, 0
    %p70 = por %p68, %p69
    %p71 = scmp.ne.s32.totalorder %s60, %s63
    %p72 = scmp.eq.s32.totalorder %s15, 1
    %p73 = por %p71, %p72
    %p74 = scmp.ne.s32.totalorder %s63, %s64
    %p75 = scmp.eq.s32.totalorder %s15, 0
    %p76 = por %p74, %p75
    %p77 = scmp.ne.s32.totalorder %s63, %s64
    %p78 = scmp.eq.s32.totalorder %s16, 1
    %p79 = por %p77, %p78
    %p81 = scmp.ne.s32.totalorder %s64, %s80
    %p82 = scmp.eq.s32.totalorder %s16, 0
    %p83 = por %p81, %p82
    %s84 = ssub.s32 %s17, %s29
    %s85 = ssub.s32 %s18, %s25
    %s86 = sor.u32 %s84, %s85
    %p87 = scmp.eq.s32.totalorder %s86, 0
    %s89 = sadd.s32 %s88, 1
    %s90 = scalar_select %p87, %s88, %s89
    %p93 = pneg %p87
    %p94 = scmp.eq.s32.totalorder %s10, 1
    %p95 = por %p93, %p94
    %p96 = scmp.ne.s32.totalorder %s88, %s91
    %p97 = scmp.eq.s32.totalorder %s10, 0
    %p98 = por %p96, %p97
    %p99 = scmp.ne.s32.totalorder %s88, %s91
    %p100 = scmp.eq.s32.totalorder %s15, 1
    %p101 = por %p99, %p100
    %p102 = scmp.ne.s32.totalorder %s91, %s92
    %p103 = scmp.eq.s32.totalorder %s15, 0
    %p104 = por %p102, %p103
    %p105 = scmp.ne.s32.totalorder %s91, %s92
    %p106 = scmp.eq.s32.totalorder %s16, 1
    %p107 = por %p105, %p106
    %p109 = scmp.ne.s32.totalorder %s92, %s108
    %p110 = scmp.eq.s32.totalorder %s16, 0
    %p111 = por %p109, %p110
    %s112 = ssub.s32 %s17, %s29
    %s113 = ssub.s32 %s18, %s25
    %s114 = sor.u32 %s112, %s113
    %p115 = scmp.eq.s32.totalorder %s114, 0
    %s117 = sadd.s32 %s116, 1
    %s118 = scalar_select %p115, %s116, %s117
    %p121 = pneg %p115
    %p122 = scmp.eq.s32.totalorder %s10, 1
    %p123 = por %p121, %p122
    %p124 = scmp.ne.s32.totalorder %s116, %s119
    %p125 = scmp.eq.s32.totalorder %s10, 0
    %p126 = por %p124, %p125
    %p127 = scmp.ne.s32.totalorder %s116, %s119
    %p128 = scmp.eq.s32.totalorder %s15, 1
    %p129 = por %p127, %p128
    %p130 = scmp.ne.s32.totalorder %s119, %s120
    %p131 = scmp.eq.s32.totalorder %s15, 0
    %p132 = por %p130, %p131
    %p133 = scmp.ne.s32.totalorder %s119, %s120
    %p134 = scmp.eq.s32.totalorder %s16, 1
    %p135 = por %p133, %p134
    %p137 = scmp.ne.s32.totalorder %s120, %s136
    %p138 = scmp.eq.s32.totalorder %s16, 0
    %p139 = por %p137, %p138
    %p140 = scmp.le.s32.totalorder 1, %s10
    %p141 = scmp.lt.s32.totalorder %s10, 3
    %p142 = pnand %p140, %p141
    %p143 = pneg %p142
    // Predicated region
    $region9: #{tpu_custom_call.1} parent=5 // pred_check
      _
    $region10: #{tpu_custom_call.1} parent=5 // pred_check_branch
      %145 = sbr.rel (%p142) target = $region12
    $region11: #{tpu_custom_call.1} parent=5 // pred_region
      %s146 = ssub.s32 %s10, 1
      // Predicated region
      $region13: #{tpu_custom_call.1} parent=11 // pred_check
        %p147 = pneg %p76
      $region14: #{tpu_custom_call.1} parent=11 // pred_check_branch
        %149 = sbr.rel (%p147) target = $region16
      $region15: #{tpu_custom_call.1} parent=11 // pred_region
        %p150 = scmp.lt.s32.totalorder %s20, 0
        %s151 = scalar_select %p150, %s20, 0
        %s152 = scalar_lea.vmem %s1, %s151
      $region16: #{tpu_custom_call.1} parent=11 // pred_fallthru
        _
    $region12: #{tpu_custom_call.1} parent=5 // pred_fallthru
      _
    %p153 = scmp.lt.s32.totalorder %s10, 2
    // Predicated region
    $region17: #{tpu_custom_call.1} parent=5 // pred_check
      %p154 = pneg %p153
    $region18: #{tpu_custom_call.1} parent=5 // pred_check_branch
      %156 = sbr.rel (%p154) target = $region20
    $region19: #{tpu_custom_call.1} parent=5 // pred_region
      // Predicated region
      $region21: #{tpu_custom_call.1} parent=19 // pred_check
        %p157 = pneg %p44
      $region22: #{tpu_custom_call.1} parent=19 // pred_check_branch
        %159 = sbr.rel (%p157) target = $region24
      $region23: #{tpu_custom_call.1} parent=19 // pred_region
        %p160 = scmp.lt.s32.totalorder %s17, 1
        %s161 = scalar_select %p160, %s17, 1
        %p162 = scmp.lt.s32.totalorder %s18, 0
        %s163 = scalar_select %p162, %s18, 0
        %s164 = smul.addr %s161, 54
        %s165 = sadd.s32 %s163, %s164
        %s166 = smul.addr %s165, 8
        %s167 = scalar_lea.vmem %s0, %s166
      $region24: #{tpu_custom_call.1} parent=19 // pred_fallthru
        _
    $region20: #{tpu_custom_call.1} parent=5 // pred_fallthru
      _
    %p168 = scmp.le.s32.totalorder 1, %s10
    %p169 = scmp.lt.s32.totalorder %s10, 3
    %p170 = pnand %p168, %p169
    %p171 = pneg %p170
    // Predicated region
    $region25: #{tpu_custom_call.1} parent=5 // pred_check
      _
    $region26: #{tpu_custom_call.1} parent=5 // pred_check_branch
      %173 = sbr.rel (%p170) target = $region28
    $region27: #{tpu_custom_call.1} parent=5 // pred_region
      %s174 = ssub.s32 %s10, 1
      %p175 = scmp.lt.s32.totalorder %s19, 1
      %s176 = scalar_select %p175, %s19, 1
      %p177 = scmp.lt.s32.totalorder %s20, 0
      %s178 = scalar_select %p177, %s20, 0
      %s179 = smul.addr %s176, 54
      %s180 = sadd.s32 %s178, %s179
      %s181 = smul.addr %s180, 8
      %s182 = scalar_lea.vmem %s0, %s181
      %p183 = pneg %p50
      %p184 = pneg %p47
      %p185 = scmp.lt.s32.totalorder %s20, 0
      %s186 = scalar_select %p185, %s20, 0
      %s187 = scalar_lea.vmem %s1, %s186
      %p188 = pneg %p76
      %p189 = pneg %p73
      %p190 = pneg %p104
      %p191 = pneg %p101
      %p192 = scmp.lt.s32.totalorder %s19, 1
      %s193 = scalar_select %p192, %s19, 1
      %p194 = scmp.lt.s32.totalorder %s20, 0
      %s195 = scalar_select %p194, %s20, 0
      %s196 = smul.addr %s193, 8
      %s197 = sadd.s32 %s195, %s196
      %s198 = smul.addr %s197, 8
      %s199 = scalar_lea.vmem %s2, %s198
      %p200 = pneg %p132
      %p201 = pneg %p129
      %p202 = scmp.lt.s32.totalorder %s19, 1
      %s203 = scalar_select %p202, %s19, 1
      %p204 = scmp.lt.s32.totalorder %s20, 0
      %s205 = scalar_select %p204, %s20, 0
      %s206 = smul.addr %s203, 8
      %s207 = sadd.s32 %s205, %s206
      %s208 = smul.addr %s207, 8
      %s209 = scalar_lea.vmem %s3, %s208
      %p210 = scmp.lt.s32.totalorder %s19, 1
      %s211 = scalar_select %p210, %s19, 1
      %p212 = scmp.lt.s32.totalorder %s20, 0
      %s213 = scalar_select %p212, %s20, 0
      %s214 = smul.addr %s211, 54
      %s215 = sadd.s32 %s213, %s214
      %s216 = smul.addr %s215, 8
      %s217 = scalar_lea.vmem %s0, %s216
      %p218 = scmp.lt.s32.totalorder %s20, 0
      %s219 = scalar_select %p218, %s20, 0
      %s220 = scalar_lea.vmem %s1, %s219
      %p221 = scmp.lt.s32.totalorder %s19, 1
      %s222 = scalar_select %p221, %s19, 1
      %p223 = scmp.lt.s32.totalorder %s20, 0
      %s224 = scalar_select %p223, %s20, 0
      %s225 = smul.addr %s222, 8
      %s226 = sadd.s32 %s224, %s225
      %s227 = smul.addr %s226, 8
      %s228 = scalar_lea.vmem %s2, %s227
      %p229 = scmp.lt.s32.totalorder %s19, 1
      %s230 = scalar_select %p229, %s19, 1
      %p231 = scmp.lt.s32.totalorder %s20, 0
      %s232 = scalar_select %p231, %s20, 0
      %s233 = smul.addr %s230, 8
      %s234 = sadd.s32 %s232, %s233
      %s235 = smul.addr %s234, 8
      %s236 = scalar_lea.vmem %s3, %s235
      %v237 = vld [vmem:[%s217] ss:$2 sm:$0xff]
      %s238 = scalar_lea.vmem %s217, 48
      %v239 = vld [vmem:[%s238] ss:$2 sm:$0xff]
      %s240 = scalar_lea.vmem %s217, 96
      %v241 = vld [vmem:[%s240] ss:$2 sm:$0xff]
      %s242 = scalar_lea.vmem %s217, 144
      %v243 = vld [vmem:[%s242] ss:$2 sm:$0xff]
      %s244 = scalar_lea.vmem %s217, 192
      %v245 = vld [vmem:[%s244] ss:$2 sm:$0xff]
      %s246 = scalar_lea.vmem %s217, 240
      %v247 = vld [vmem:[%s246] ss:$2 sm:$0xff]
      %s248 = scalar_lea.vmem %s217, 288
      %v249 = vld [vmem:[%s248] ss:$2 sm:$0xff]
      %s250 = scalar_lea.vmem %s217, 336
      %v251 = vld [vmem:[%s250] ss:$2 sm:$0xff]
      %v252 = vld [vmem:[%s220] sm:$0x1]
      %v254 = vlaneseq
      %v255 = vshrl.u32 %v254, 7
      %v256 = vsub.s32 0, %v255
      %v257 = vrot.slane %v252, %v256
      %v259 = vadd.f32 %v237, %v257
      %v260 = vadd.f32 %v239, %v257
      %v261 = vadd.f32 %v241, %v257
      %v262 = vadd.f32 %v243, %v257
      %v263 = vadd.f32 %v245, %v257
      %v264 = vadd.f32 %v247, %v257
      %v265 = vadd.f32 %v249, %v257
      %v266 = vadd.f32 %v251, %v257
      %s267 = scalar_lea.vmem %s217, 1
      %v268 = vld [vmem:[%s267] ss:$2 sm:$0xff]
      %s269 = scalar_lea.vmem %s217, 49
      %v270 = vld [vmem:[%s269] ss:$2 sm:$0xff]
      %s271 = scalar_lea.vmem %s217, 97
      %v272 = vld [vmem:[%s271] ss:$2 sm:$0xff]
      %s273 = scalar_lea.vmem %s217, 145
      %v274 = vld [vmem:[%s273] ss:$2 sm:$0xff]
      %s275 = scalar_lea.vmem %s217, 193
      %v276 = vld [vmem:[%s275] ss:$2 sm:$0xff]
      %s277 = scalar_lea.vmem %s217, 241
      %v278 = vld [vmem:[%s277] ss:$2 sm:$0xff]
      %s279 = scalar_lea.vmem %s217, 289
      %v280 = vld [vmem:[%s279] ss:$2 sm:$0xff]
      %s281 = scalar_lea.vmem %s217, 337
      %v282 = vld [vmem:[%s281] ss:$2 sm:$0xff]
      %s283 = scalar_lea.vmem %s220, 1
      %v284 = vld [vmem:[%s283] sm:$0x1]
      %v286 = vlaneseq
      %v287 = vshrl.u32 %v286, 7
      %v288 = vsub.s32 0, %v287
      %v289 = vrot.slane %v284, %v288
      %v291 = vadd.f32 %v268, %v289
      %v292 = vadd.f32 %v270, %v289
      %v293 = vadd.f32 %v272, %v289
      %v294 = vadd.f32 %v274, %v289
      %v295 = vadd.f32 %v276, %v289
      %v296 = vadd.f32 %v278, %v289
      %v297 = vadd.f32 %v280, %v289
      %v298 = vadd.f32 %v282, %v289
      %vm299 = vcmp.gt.f32.partialorder %v291, %v259
      %vm300 = vcmp.gt.f32.partialorder %v292, %v260
      %vm301 = vcmp.gt.f32.partialorder %v293, %v261
      %vm302 = vcmp.gt.f32.partialorder %v294, %v262
      %vm303 = vcmp.gt.f32.partialorder %v295, %v263
      %vm304 = vcmp.gt.f32.partialorder %v296, %v264
      %vm305 = vcmp.gt.f32.partialorder %v297, %v265
      %vm306 = vcmp.gt.f32.partialorder %v298, %v266
      %v307 = vsel %vm299, 1, 0
      %v308 = vsel %vm300, 1, 0
      %v309 = vsel %vm301, 1, 0
      %v310 = vsel %vm302, 1, 0
      %v311 = vsel %vm303, 1, 0
      %v312 = vsel %vm304, 1, 0
      %v313 = vsel %vm305, 1, 0
      %v314 = vsel %vm306, 1, 0
      %v315 = vmax.f32 %v259, %v291
      %v316 = vmax.f32 %v260, %v292
      %v317 = vmax.f32 %v261, %v293
      %v318 = vmax.f32 %v262, %v294
      %v319 = vmax.f32 %v263, %v295
      %v320 = vmax.f32 %v264, %v296
      %v321 = vmax.f32 %v265, %v297
      %v322 = vmax.f32 %v266, %v298
      %s323 = scalar_lea.vmem %s217, 2
      %v324 = vld [vmem:[%s323] ss:$2 sm:$0xff]
      %s325 = scalar_lea.vmem %s217, 50
      %v326 = vld [vmem:[%s325] ss:$2 sm:$0xff]
      %s327 = scalar_lea.vmem %s217, 98
      %v328 = vld [vmem:[%s327] ss:$2 sm:$0xff]
      %s329 = scalar_lea.vmem %s217, 146
      %v330 = vld [vmem:[%s329] ss:$2 sm:$0xff]
      %s331 = scalar_lea.vmem %s217, 194
      %v332 = vld [vmem:[%s331] ss:$2 sm:$0xff]
      %s333 = scalar_lea.vmem %s217, 242
      %v334 = vld [vmem:[%s333] ss:$2 sm:$0xff]
      %s335 = scalar_lea.vmem %s217, 290
      %v336 = vld [vmem:[%s335] ss:$2 sm:$0xff]
      %s337 = scalar_lea.vmem %s217, 338
      %v338 = vld [vmem:[%s337] ss:$2 sm:$0xff]
      %s339 = scalar_lea.vmem %s220, 2
      %v340 = vld [vmem:[%s339] sm:$0x1]
      %v342 = vlaneseq
      %v343 = vshrl.u32 %v342, 7
      %v344 = vsub.s32 0, %v343
      %v345 = vrot.slane %v340, %v344
      %v347 = vadd.f32 %v324, %v345
      %v348 = vadd.f32 %v326, %v345
      %v349 = vadd.f32 %v328, %v345
      %v350 = vadd.f32 %v330, %v345
      %v351 = vadd.f32 %v332, %v345
      %v352 = vadd.f32 %v334, %v345
      %v353 = vadd.f32 %v336, %v345
      %v354 = vadd.f32 %v338, %v345
      %vm355 = vcmp.gt.f32.partialorder %v347, %v315
      %vm356 = vcmp.gt.f32.partialorder %v348, %v316
      %vm357 = vcmp.gt.f32.partialorder %v349, %v317
      %vm358 = vcmp.gt.f32.partialorder %v350, %v318
      %vm359 = vcmp.gt.f32.partialorder %v351, %v319
      %vm360 = vcmp.gt.f32.partialorder %v352, %v320
      %vm361 = vcmp.gt.f32.partialorder %v353, %v321
      %vm362 = vcmp.gt.f32.partialorder %v354, %v322
      %v363 = vsel %vm355, 2, %v307
      %v364 = vsel %vm356, 2, %v308
      %v365 = vsel %vm357, 2, %v309
      %v366 = vsel %vm358, 2, %v310
      %v367 = vsel %vm359, 2, %v311
      %v368 = vsel %vm360, 2, %v312
      %v369 = vsel %vm361, 2, %v313
      %v370 = vsel %vm362, 2, %v314
      %v371 = vmax.f32 %v315, %v347
      %v372 = vmax.f32 %v316, %v348
      %v373 = vmax.f32 %v317, %v349
      %v374 = vmax.f32 %v318, %v350
      %v375 = vmax.f32 %v319, %v351
      %v376 = vmax.f32 %v320, %v352
      %v377 = vmax.f32 %v321, %v353
      %v378 = vmax.f32 %v322, %v354
      %s379 = scalar_lea.vmem %s217, 24
      %v380 = vld [vmem:[%s379] ss:$2 sm:$0xff]
      %s381 = scalar_lea.vmem %s379, 48
      %v382 = vld [vmem:[%s381] ss:$2 sm:$0xff]
      %s383 = scalar_lea.vmem %s379, 96
      %v384 = vld [vmem:[%s383] ss:$2 sm:$0xff]
      %s385 = scalar_lea.vmem %s379, 144
      %v386 = vld [vmem:[%s385] ss:$2 sm:$0xff]
      %s387 = scalar_lea.vmem %s379, 192
      %v388 = vld [vmem:[%s387] ss:$2 sm:$0xff]
      %s389 = scalar_lea.vmem %s379, 240
      %v390 = vld [vmem:[%s389] ss:$2 sm:$0xff]
      %s391 = scalar_lea.vmem %s379, 288
      %v392 = vld [vmem:[%s391] ss:$2 sm:$0xff]
      %s393 = scalar_lea.vmem %s379, 336
      %v394 = vld [vmem:[%s393] ss:$2 sm:$0xff]
      %s395 = scalar_lea.vmem %s220, 3
      %v396 = vld [vmem:[%s395] sm:$0x1]
      %v398 = vlaneseq
      %v399 = vshrl.u32 %v398, 7
      %v400 = vsub.s32 0, %v399
      %v401 = vrot.slane %v396, %v400
      %v403 = vadd.f32 %v380, %v401
      %v404 = vadd.f32 %v382, %v401
      %v405 = vadd.f32 %v384, %v401
      %v406 = vadd.f32 %v386, %v401
      %v407 = vadd.f32 %v388, %v401
      %v408 = vadd.f32 %v390, %v401
      %v409 = vadd.f32 %v392, %v401
      %v410 = vadd.f32 %v394, %v401
      %vm411 = vcmp.gt.f32.partialorder %v403, %v371
      %vm412 = vcmp.gt.f32.partialorder %v404, %v372
      %vm413 = vcmp.gt.f32.partialorder %v405, %v373
      %vm414 = vcmp.gt.f32.partialorder %v406, %v374
      %vm415 = vcmp.gt.f32.partialorder %v407, %v375
      %vm416 = vcmp.gt.f32.partialorder %v408, %v376
      %vm417 = vcmp.gt.f32.partialorder %v409, %v377
      %vm418 = vcmp.gt.f32.partialorder %v410, %v378
      %v419 = vsel %vm411, 3, %v363
      %v420 = vsel %vm412, 3, %v364
      %v421 = vsel %vm413, 3, %v365
      %v422 = vsel %vm414, 3, %v366
      %v423 = vsel %vm415, 3, %v367
      %v424 = vsel %vm416, 3, %v368
      %v425 = vsel %vm417, 3, %v369
      %v426 = vsel %vm418, 3, %v370
      %v427 = vmax.f32 %v371, %v403
      %v428 = vmax.f32 %v372, %v404
      %v429 = vmax.f32 %v373, %v405
      %v430 = vmax.f32 %v374, %v406
      %v431 = vmax.f32 %v375, %v407
      %v432 = vmax.f32 %v376, %v408
      %v433 = vmax.f32 %v377, %v409
      %v434 = vmax.f32 %v378, %v410
      %s435 = scalar_lea.vmem %s379, 1
      %v436 = vld [vmem:[%s435] ss:$2 sm:$0xff]
      %s437 = scalar_lea.vmem %s379, 49
      %v438 = vld [vmem:[%s437] ss:$2 sm:$0xff]
      %s439 = scalar_lea.vmem %s379, 97
      %v440 = vld [vmem:[%s439] ss:$2 sm:$0xff]
      %s441 = scalar_lea.vmem %s379, 145
      %v442 = vld [vmem:[%s441] ss:$2 sm:$0xff]
      %s443 = scalar_lea.vmem %s379, 193
      %v444 = vld [vmem:[%s443] ss:$2 sm:$0xff]
      %s445 = scalar_lea.vmem %s379, 241
      %v446 = vld [vmem:[%s445] ss:$2 sm:$0xff]
      %s447 = scalar_lea.vmem %s379, 289
      %v448 = vld [vmem:[%s447] ss:$2 sm:$0xff]
      %s449 = scalar_lea.vmem %s379, 337
      %v450 = vld [vmem:[%s449] ss:$2 sm:$0xff]
      %s451 = scalar_lea.vmem %s220, 4
      %v452 = vld [vmem:[%s451] sm:$0x1]
      %v454 = vlaneseq
      %v455 = vshrl.u32 %v454, 7
      %v456 = vsub.s32 0, %v455
      %v457 = vrot.slane %v452, %v456
      %v459 = vadd.f32 %v436, %v457
      %v460 = vadd.f32 %v438, %v457
      %v461 = vadd.f32 %v440, %v457
      %v462 = vadd.f32 %v442, %v457
      %v463 = vadd.f32 %v444, %v457
      %v464 = vadd.f32 %v446, %v457
      %v465 = vadd.f32 %v448, %v457
      %v466 = vadd.f32 %v450, %v457
      %vm467 = vcmp.gt.f32.partialorder %v459, %v427
      %vm468 = vcmp.gt.f32.partialorder %v460, %v428
      %vm469 = vcmp.gt.f32.partialorder %v461, %v429
      %vm470 = vcmp.gt.f32.partialorder %v462, %v430
      %vm471 = vcmp.gt.f32.partialorder %v463, %v431
      %vm472 = vcmp.gt.f32.partialorder %v464, %v432
      %vm473 = vcmp.gt.f32.partialorder %v465, %v433
      %vm474 = vcmp.gt.f32.partialorder %v466, %v434
      %v475 = vsel %vm467, 4, %v419
      %v476 = vsel %vm468, 4, %v420
      %v477 = vsel %vm469, 4, %v421
      %v478 = vsel %vm470, 4, %v422
      %v479 = vsel %vm471, 4, %v423
      %v480 = vsel %vm472, 4, %v424
      %v481 = vsel %vm473, 4, %v425
      %v482 = vsel %vm474, 4, %v426
      %v483 = vmax.f32 %v427, %v459
      %v484 = vmax.f32 %v428, %v460
      %v485 = vmax.f32 %v429, %v461
      %v486 = vmax.f32 %v430, %v462
      %v487 = vmax.f32 %v431, %v463
      %v488 = vmax.f32 %v432, %v464
      %v489 = vmax.f32 %v433, %v465
      %v490 = vmax.f32 %v434, %v466
      %s491 = scalar_lea.vmem %s379, 2
      %v492 = vld [vmem:[%s491] ss:$2 sm:$0xff]
      %s493 = scalar_lea.vmem %s379, 50
      %v494 = vld [vmem:[%s493] ss:$2 sm:$0xff]
      %s495 = scalar_lea.vmem %s379, 98
      %v496 = vld [vmem:[%s495] ss:$2 sm:$0xff]
      %s497 = scalar_lea.vmem %s379, 146
      %v498 = vld [vmem:[%s497] ss:$2 sm:$0xff]
      %s499 = scalar_lea.vmem %s379, 194
      %v500 = vld [vmem:[%s499] ss:$2 sm:$0xff]
      %s501 = scalar_lea.vmem %s379, 242
      %v502 = vld [vmem:[%s501] ss:$2 sm:$0xff]
      %s503 = scalar_lea.vmem %s379, 290
      %v504 = vld [vmem:[%s503] ss:$2 sm:$0xff]
      %s505 = scalar_lea.vmem %s379, 338
      %v506 = vld [vmem:[%s505] ss:$2 sm:$0xff]
      %s507 = scalar_lea.vmem %s220, 5
      %v508 = vld [vmem:[%s507] sm:$0x1]
      %v510 = vlaneseq
      %v511 = vshrl.u32 %v510, 7
      %v512 = vsub.s32 0, %v511
      %v513 = vrot.slane %v508, %v512
      %v515 = vadd.f32 %v492, %v513
      %v516 = vadd.f32 %v494, %v513
      %v517 = vadd.f32 %v496, %v513
      %v518 = vadd.f32 %v498, %v513
      %v519 = vadd.f32 %v500, %v513
      %v520 = vadd.f32 %v502, %v513
      %v521 = vadd.f32 %v504, %v513
      %v522 = vadd.f32 %v506, %v513
      %vm523 = vcmp.gt.f32.partialorder %v515, %v483
      %vm524 = vcmp.gt.f32.partialorder %v516, %v484
      %vm525 = vcmp.gt.f32.partialorder %v517, %v485
      %vm526 = vcmp.gt.f32.partialorder %v518, %v486
      %vm527 = vcmp.gt.f32.partialorder %v519, %v487
      %vm528 = vcmp.gt.f32.partialorder %v520, %v488
      %vm529 = vcmp.gt.f32.partialorder %v521, %v489
      %vm530 = vcmp.gt.f32.partialorder %v522, %v490
      %v531 = vsel %vm523, 5, %v475
      %v532 = vsel %vm524, 5, %v476
      %v533 = vsel %vm525, 5, %v477
      %v534 = vsel %vm526, 5, %v478
      %v535 = vsel %vm527, 5, %v479
      %v536 = vsel %vm528, 5, %v480
      %v537 = vsel %vm529, 5, %v481
      %v538 = vsel %vm530, 5, %v482
      %v539 = vmax.f32 %v483, %v515
      %v540 = vmax.f32 %v484, %v516
      %v541 = vmax.f32 %v485, %v517
      %v542 = vmax.f32 %v486, %v518
      %v543 = vmax.f32 %v487, %v519
      %v544 = vmax.f32 %v488, %v520
      %v545 = vmax.f32 %v489, %v521
      %v546 = vmax.f32 %v490, %v522
      %s547 = scalar_lea.vmem %s217, 48
      %v548 = vld [vmem:[%s547] ss:$2 sm:$0xff]
      %s549 = scalar_lea.vmem %s547, 48
      %v550 = vld [vmem:[%s549] ss:$2 sm:$0xff]
      %s551 = scalar_lea.vmem %s547, 96
      %v552 = vld [vmem:[%s551] ss:$2 sm:$0xff]
      %s553 = scalar_lea.vmem %s547, 144
      %v554 = vld [vmem:[%s553] ss:$2 sm:$0xff]
      %s555 = scalar_lea.vmem %s547, 192
      %v556 = vld [vmem:[%s555] ss:$2 sm:$0xff]
      %s557 = scalar_lea.vmem %s547, 240
      %v558 = vld [vmem:[%s557] ss:$2 sm:$0xff]
      %s559 = scalar_lea.vmem %s547, 288
      %v560 = vld [vmem:[%s559] ss:$2 sm:$0xff]
      %s561 = scalar_lea.vmem %s547, 336
      %v562 = vld [vmem:[%s561] ss:$2 sm:$0xff]
      %s563 = scalar_lea.vmem %s220, 6
      %v564 = vld [vmem:[%s563] sm:$0x1]
      %v566 = vlaneseq
      %v567 = vshrl.u32 %v566, 7
      %v568 = vsub.s32 0, %v567
      %v569 = vrot.slane %v564, %v568
      %v571 = vadd.f32 %v548, %v569
      %v572 = vadd.f32 %v550, %v569
      %v573 = vadd.f32 %v552, %v569
      %v574 = vadd.f32 %v554, %v569
      %v575 = vadd.f32 %v556, %v569
      %v576 = vadd.f32 %v558, %v569
      %v577 = vadd.f32 %v560, %v569
      %v578 = vadd.f32 %v562, %v569
      %vm579 = vcmp.gt.f32.partialorder %v571, %v539
      %vm580 = vcmp.gt.f32.partialorder %v572, %v540
      %vm581 = vcmp.gt.f32.partialorder %v573, %v541
      %vm582 = vcmp.gt.f32.partialorder %v574, %v542
      %vm583 = vcmp.gt.f32.partialorder %v575, %v543
      %vm584 = vcmp.gt.f32.partialorder %v576, %v544
      %vm585 = vcmp.gt.f32.partialorder %v577, %v545
      %vm586 = vcmp.gt.f32.partialorder %v578, %v546
      %v587 = vsel %vm579, 6, %v531
      %v588 = vsel %vm580, 6, %v532
      %v589 = vsel %vm581, 6, %v533
      %v590 = vsel %vm582, 6, %v534
      %v591 = vsel %vm583, 6, %v535
      %v592 = vsel %vm584, 6, %v536
      %v593 = vsel %vm585, 6, %v537
      %v594 = vsel %vm586, 6, %v538
      %v595 = vmax.f32 %v539, %v571
      %v596 = vmax.f32 %v540, %v572
      %v597 = vmax.f32 %v541, %v573
      %v598 = vmax.f32 %v542, %v574
      %v599 = vmax.f32 %v543, %v575
      %v600 = vmax.f32 %v544, %v576
      %v601 = vmax.f32 %v545, %v577
      %v602 = vmax.f32 %v546, %v578
      %s603 = scalar_lea.vmem %s547, 1
      %v604 = vld [vmem:[%s603] ss:$2 sm:$0xff]
      %s605 = scalar_lea.vmem %s547, 49
      %v606 = vld [vmem:[%s605] ss:$2 sm:$0xff]
      %s607 = scalar_lea.vmem %s547, 97
      %v608 = vld [vmem:[%s607] ss:$2 sm:$0xff]
      %s609 = scalar_lea.vmem %s547, 145
      %v610 = vld [vmem:[%s609] ss:$2 sm:$0xff]
      %s611 = scalar_lea.vmem %s547, 193
      %v612 = vld [vmem:[%s611] ss:$2 sm:$0xff]
      %s613 = scalar_lea.vmem %s547, 241
      %v614 = vld [vmem:[%s613] ss:$2 sm:$0xff]
      %s615 = scalar_lea.vmem %s547, 289
      %v616 = vld [vmem:[%s615] ss:$2 sm:$0xff]
      %s617 = scalar_lea.vmem %s547, 337
      %v618 = vld [vmem:[%s617] ss:$2 sm:$0xff]
      %s619 = scalar_lea.vmem %s220, 7
      %v620 = vld [vmem:[%s619] sm:$0x1]
      %v622 = vlaneseq
      %v623 = vshrl.u32 %v622, 7
      %v624 = vsub.s32 0, %v623
      %v625 = vrot.slane %v620, %v624
      %v627 = vadd.f32 %v604, %v625
      %v628 = vadd.f32 %v606, %v625
      %v629 = vadd.f32 %v608, %v625
      %v630 = vadd.f32 %v610, %v625
      %v631 = vadd.f32 %v612, %v625
      %v632 = vadd.f32 %v614, %v625
      %v633 = vadd.f32 %v616, %v625
      %v634 = vadd.f32 %v618, %v625
      %vm635 = vcmp.gt.f32.partialorder %v627, %v595
      %vm636 = vcmp.gt.f32.partialorder %v628, %v596
      %vm637 = vcmp.gt.f32.partialorder %v629, %v597
      %vm638 = vcmp.gt.f32.partialorder %v630, %v598
      %vm639 = vcmp.gt.f32.partialorder %v631, %v599
      %vm640 = vcmp.gt.f32.partialorder %v632, %v600
      %vm641 = vcmp.gt.f32.partialorder %v633, %v601
      %vm642 = vcmp.gt.f32.partialorder %v634, %v602
      %v643 = vsel %vm635, 7, %v587
      %v644 = vsel %vm636, 7, %v588
      %v645 = vsel %vm637, 7, %v589
      %v646 = vsel %vm638, 7, %v590
      %v647 = vsel %vm639, 7, %v591
      %v648 = vsel %vm640, 7, %v592
      %v649 = vsel %vm641, 7, %v593
      %v650 = vsel %vm642, 7, %v594
      %v651 = vmax.f32 %v595, %v627
      %v652 = vmax.f32 %v596, %v628
      %v653 = vmax.f32 %v597, %v629
      %v654 = vmax.f32 %v598, %v630
      %v655 = vmax.f32 %v599, %v631
      %v656 = vmax.f32 %v600, %v632
      %v657 = vmax.f32 %v601, %v633
      %v658 = vmax.f32 %v602, %v634
      %s659 = scalar_lea.vmem %s547, 2
      %v660 = vld [vmem:[%s659] ss:$2 sm:$0xff]
      %s661 = scalar_lea.vmem %s547, 50
      %v662 = vld [vmem:[%s661] ss:$2 sm:$0xff]
      %s663 = scalar_lea.vmem %s547, 98
      %v664 = vld [vmem:[%s663] ss:$2 sm:$0xff]
      %s665 = scalar_lea.vmem %s547, 146
      %v666 = vld [vmem:[%s665] ss:$2 sm:$0xff]
      %s667 = scalar_lea.vmem %s547, 194
      %v668 = vld [vmem:[%s667] ss:$2 sm:$0xff]
      %s669 = scalar_lea.vmem %s547, 242
      %v670 = vld [vmem:[%s669] ss:$2 sm:$0xff]
      %s671 = scalar_lea.vmem %s547, 290
      %v672 = vld [vmem:[%s671] ss:$2 sm:$0xff]
      %s673 = scalar_lea.vmem %s547, 338
      %v674 = vld [vmem:[%s673] ss:$2 sm:$0xff]
      %s675 = scalar_lea.vmem %s220, 8
      %v676 = vld [vmem:[%s675] sm:$0x1]
      %v678 = vlaneseq
      %v679 = vshrl.u32 %v678, 7
      %v680 = vsub.s32 0, %v679
      %v681 = vrot.slane %v676, %v680
      %v683 = vadd.f32 %v660, %v681
      %v684 = vadd.f32 %v662, %v681
      %v685 = vadd.f32 %v664, %v681
      %v686 = vadd.f32 %v666, %v681
      %v687 = vadd.f32 %v668, %v681
      %v688 = vadd.f32 %v670, %v681
      %v689 = vadd.f32 %v672, %v681
      %v690 = vadd.f32 %v674, %v681
      %vm691 = vcmp.gt.f32.partialorder %v683, %v651
      %vm692 = vcmp.gt.f32.partialorder %v684, %v652
      %vm693 = vcmp.gt.f32.partialorder %v685, %v653
      %vm694 = vcmp.gt.f32.partialorder %v686, %v654
      %vm695 = vcmp.gt.f32.partialorder %v687, %v655
      %vm696 = vcmp.gt.f32.partialorder %v688, %v656
      %vm697 = vcmp.gt.f32.partialorder %v689, %v657
      %vm698 = vcmp.gt.f32.partialorder %v690, %v658
      %v699 = vsel %vm691, 8, %v643
      %v700 = vsel %vm692, 8, %v644
      %v701 = vsel %vm693, 8, %v645
      %v702 = vsel %vm694, 8, %v646
      %v703 = vsel %vm695, 8, %v647
      %v704 = vsel %vm696, 8, %v648
      %v705 = vsel %vm697, 8, %v649
      %v706 = vsel %vm698, 8, %v650
      %v707 = vmax.f32 %v651, %v683
      %v708 = vmax.f32 %v652, %v684
      %v709 = vmax.f32 %v653, %v685
      %v710 = vmax.f32 %v654, %v686
      %v711 = vmax.f32 %v655, %v687
      %v712 = vmax.f32 %v656, %v688
      %v713 = vmax.f32 %v657, %v689
      %v714 = vmax.f32 %v658, %v690
      %vm715 = vcmask 31744
      %716 = vst.msk [vmem:[%s228] sm:$0xff] %vm715, %v707
      %717 = vst.msk [vmem:[%s228 + $0x8] sm:$0xff] %vm715, %v708
      %718 = vst.msk [vmem:[%s228 + $0x10] sm:$0xff] %vm715, %v709
      %719 = vst.msk [vmem:[%s228 + $0x18] sm:$0xff] %vm715, %v710
      %720 = vst.msk [vmem:[%s228 + $0x20] sm:$0xff] %vm715, %v711
      %721 = vst.msk [vmem:[%s228 + $0x28] sm:$0xff] %vm715, %v712
      %722 = vst.msk [vmem:[%s228 + $0x30] sm:$0xff] %vm715, %v713
      %723 = vst.msk [vmem:[%s228 + $0x38] sm:$0xff] %vm715, %v714
      %724 = vst.msk [vmem:[%s236] sm:$0xff] %vm715, %v699
      %725 = vst.msk [vmem:[%s236 + $0x8] sm:$0xff] %vm715, %v700
      %726 = vst.msk [vmem:[%s236 + $0x10] sm:$0xff] %vm715, %v701
      %727 = vst.msk [vmem:[%s236 + $0x18] sm:$0xff] %vm715, %v702
      %728 = vst.msk [vmem:[%s236 + $0x20] sm:$0xff] %vm715, %v703
      %729 = vst.msk [vmem:[%s236 + $0x28] sm:$0xff] %vm715, %v704
      %730 = vst.msk [vmem:[%s236 + $0x30] sm:$0xff] %vm715, %v705
      %731 = vst.msk [vmem:[%s236 + $0x38] sm:$0xff] %vm715, %v706
      %p732 = scmp.lt.s32.totalorder %s19, 1
      %s733 = scalar_select %p732, %s19, 1
      %p734 = scmp.lt.s32.totalorder %s20, 0
      %s735 = scalar_select %p734, %s20, 0
      %s736 = smul.addr %s733, 8
      %s737 = sadd.s32 %s735, %s736
      %s738 = smul.addr %s737, 8
      %s739 = scalar_lea.vmem %s2, %s738
      %p740 = scmp.lt.s32.totalorder %s19, 1
      %s741 = scalar_select %p740, %s19, 1
      %p742 = scmp.lt.s32.totalorder %s20, 0
      %s743 = scalar_select %p742, %s20, 0
      %s744 = smul.addr %s741, 8
      %s745 = sadd.s32 %s743, %s744
      %s746 = smul.addr %s745, 8
      %s747 = scalar_lea.vmem %s3, %s746
      // Predicated region
      $region29: #{tpu_custom_call.1} parent=27 // pred_check
        %p748 = pneg %p101
      $region30: #{tpu_custom_call.1} parent=27 // pred_check_branch
        %750 = sbr.rel (%p748) target = $region32
      $region31: #{tpu_custom_call.1} parent=27 // pred_region
        _
      $region32: #{tpu_custom_call.1} parent=27 // pred_fallthru
        _
      // Predicated region
      $region33: #{tpu_custom_call.1} parent=27 // pred_check
        %p751 = pneg %p129
      $region34: #{tpu_custom_call.1} parent=27 // pred_check_branch
        %753 = sbr.rel (%p751) target = $region36
      $region35: #{tpu_custom_call.1} parent=27 // pred_region
        _
      $region36: #{tpu_custom_call.1} parent=27 // pred_fallthru
        _
    $region28: #{tpu_custom_call.1} parent=5 // pred_fallthru
      _
    %p754 = scmp.le.s32.totalorder 2, %s10
    // Predicated region
    $region37: #{tpu_custom_call.1} parent=5 // pred_check
      %p755 = pneg %p754
    $region38: #{tpu_custom_call.1} parent=5 // pred_check_branch
      %757 = sbr.rel (%p755) target = $region40
    $region39: #{tpu_custom_call.1} parent=5 // pred_region
      %s758 = ssub.s32 %s10, 2
      // Predicated region
      $region41: #{tpu_custom_call.1} parent=39 // pred_check
        %p759 = pneg %p107
      $region42: #{tpu_custom_call.1} parent=39 // pred_check_branch
        %761 = sbr.rel (%p759) target = $region44
      $region43: #{tpu_custom_call.1} parent=39 // pred_region
        %p762 = scmp.lt.s32.totalorder %s21, 1
        %s763 = scalar_select %p762, %s21, 1
        %p764 = scmp.lt.s32.totalorder %s22, 0
        %s765 = scalar_select %p764, %s22, 0
        %s766 = smul.addr %s763, 8
        %s767 = sadd.s32 %s765, %s766
        %s768 = smul.addr %s767, 8
        %s769 = scalar_lea.vmem %s2, %s768
      $region44: #{tpu_custom_call.1} parent=39 // pred_fallthru
        _
      // Predicated region
      $region45: #{tpu_custom_call.1} parent=39 // pred_check
        %p770 = pneg %p135
      $region46: #{tpu_custom_call.1} parent=39 // pred_check_branch
        %772 = sbr.rel (%p770) target = $region48
      $region47: #{tpu_custom_call.1} parent=39 // pred_region
        %p773 = scmp.lt.s32.totalorder %s21, 1
        %s774 = scalar_select %p773, %s21, 1
        %p775 = scmp.lt.s32.totalorder %s22, 0
        %s776 = scalar_select %p775, %s22, 0
        %s777 = smul.addr %s774, 8
        %s778 = sadd.s32 %s776, %s777
        %s779 = smul.addr %s778, 8
        %s780 = scalar_lea.vmem %s3, %s779
      $region48: #{tpu_custom_call.1} parent=39 // pred_fallthru
        _
    $region40: #{tpu_custom_call.1} parent=5 // pred_fallthru
      _
  $region6: #{tpu_custom_call.1} parent=0 // loop_footer
    %s14 = sadd.s32 1, %s10
  $region7: #{tpu_custom_call.1} parent=0 // loop_footer_branch
    %9 = sbr.rel target = $region3
  $region8: #{tpu_custom_call.1} parent=0 // loop_exit
    _

</llo_original>
